<compile_context>
chip_gen: v7x
topology: tpu7x:2x2x1
jax: 0.10.0
libtpu: 0.0.40
codegen_flags: <defaults>
</compile_context>

<pallas_src>
import jax
import jax.numpy as jnp
from jax.experimental import pallas as pl
from jax.experimental.pallas import tpu as pltpu


def skipgram_kernel(idx_ref, emb_hbm, w_ref, b_ref, out_ref, embeds, sems):
    # idx_ref : SMEM int32 [B]        (scalar prefetch: token ids)
    # emb_hbm : HBM  f32   [V, D]     (embedding table, never copied wholesale)
    # w_ref   : VMEM bf16  [D, TV]    (one vocab tile of the transposed output weight)
    # b_ref   : VMEM f32   [1, TV]
    # out_ref : VMEM f32   [B, TV]
    # embeds  : VMEM f32   [B, D]     (scratch: gathered embedding rows)
    # sems    : DMA semaphores [B]
    B, D = embeds.shape
    V = emb_hbm.shape[0]

    # Embedding gather: B row-sized HBM->VMEM DMAs, all started before waiting
    # so they overlap each other (and the pipelined weight-tile DMA).
    copies = []
    for i in range(B):  # B is small & static -> fully unrolled
        row = jnp.clip(idx_ref[i], 0, V - 1)  # cheap scalar-path bounds guard
        cp = pltpu.make_async_copy(
            emb_hbm.at[pl.ds(row, 1), :],
            embeds.at[pl.ds(i, 1), :],
            sems.at[i],
        )
        cp.start()
        copies.append(cp)
    for cp in copies:
        cp.wait()

    # Linear-layer tile: (B, D) @ (D, TV) on the MXU, bf16 operands with f32
    # accumulation, bias fused in-kernel.
    acc = jnp.dot(
        embeds[...].astype(jnp.bfloat16),
        w_ref[...],
        preferred_element_type=jnp.float32,
    )
    out_ref[...] = (acc + b_ref[...]).astype(out_ref.dtype)


def skipgram_forward(idx, emb_table, w_t, bias, *, tile_v=None):
    """logits = emb_table[idx] @ w_t + bias  (== Embedding + Linear forward).

    emb_table : [V, D] f32   (kept in HBM; only B rows are fetched)
    w_t       : [D, V] bf16  (nn.Linear.weight pre-transposed ONCE at init)
    bias      : [V]    f32
    """
    B = idx.shape[0]
    V, D = emb_table.shape
    assert w_t.shape == (D, V)
    if tile_v is None:
        tile_v = min(V, 2048)
    assert V % tile_v == 0 and tile_v % 128 == 0, "vocab tile must be lane-dense"
    bias_row = bias.reshape(1, V)

    cost = pl.CostEstimate(
        flops=2 * B * D * V,
        transcendentals=0,
        bytes_accessed=(
            B * D * emb_table.dtype.itemsize   # only the gathered rows
            + D * V * w_t.dtype.itemsize
            + V * bias.dtype.itemsize
            + B * V * 4
        ),
    )

    return pl.pallas_call(
        skipgram_kernel,
        out_shape=jax.ShapeDtypeStruct((B, V), jnp.float32),
        grid_spec=pltpu.PrefetchScalarGridSpec(
            num_scalar_prefetch=1,
            grid=(V // tile_v,),
            in_specs=[
                pl.BlockSpec(memory_space=pl.ANY),                 # emb table stays in HBM
                pl.BlockSpec((D, tile_v), lambda j, idx: (0, j)),  # weight tile
                pl.BlockSpec((1, tile_v), lambda j, idx: (0, j)),  # bias tile
            ],
            out_specs=pl.BlockSpec((B, tile_v), lambda j, idx: (0, j)),
            scratch_shapes=[
                pltpu.VMEM((B, D), emb_table.dtype),   # gathered rows
                pltpu.SemaphoreType.DMA((B,)),
            ],
        ),
        compiler_params=pltpu.CompilerParams(
            # Vocab tiles are independent -> shard across TensorCores on v7x.
            dimension_semantics=("parallel",),
            vmem_limit_bytes=32 * 1024 * 1024,
        ),
        cost_estimate=cost,
    )(idx, emb_table, w_t, bias_row)


if __name__ == "__main__":
    # TODO(synk): for real training, batch >=128/256 contexts per call so the MXU
    # M dimension is filled; B=8 here matches the toy module usage.
    VOCAB_SIZE = 256       # multiple of 128 -> lane-dense output tiles
    EMBEDDING_DIM = 128
    BATCH = 8
    TILE_V = 128           # 2 vocab tiles so the pipelined grid is exercised

    key = jax.random.PRNGKey(0)
    k_emb, k_w, k_b, k_idx = jax.random.split(key, 4)

    # nn.Embedding default init: N(0, 1)
    emb_table = jax.random.normal(k_emb, (VOCAB_SIZE, EMBEDDING_DIM), jnp.float32)
    # nn.Linear default init: U(-1/sqrt(D), 1/sqrt(D)) for weight and bias
    bound = 1.0 / (EMBEDDING_DIM ** 0.5)
    w_out = jax.random.uniform(
        k_w, (VOCAB_SIZE, EMBEDDING_DIM), jnp.float32, -bound, bound
    )  # PyTorch layout [out_features, in_features]
    bias = jax.random.uniform(k_b, (VOCAB_SIZE,), jnp.float32, -bound, bound)

    # One-time parameter re-layout (NOT per forward call): weight stored
    # pre-transposed as [D, V] and cast to bf16 for the MXU fast path.
    w_t = jnp.transpose(w_out).astype(jnp.bfloat16)

    idx = jax.random.randint(k_idx, (BATCH,), 0, VOCAB_SIZE, jnp.int32)

    logits = skipgram_forward(idx, emb_table, w_t, bias, tile_v=TILE_V)
    logits = jax.block_until_ready(logits)

    # Reference with the same bf16-rounded operands and f32 accumulation
    # (bf16 x bf16 products are exact in f32, so this matches the MXU path).
    ref = (
        emb_table[idx].astype(jnp.bfloat16).astype(jnp.float32)
        @ w_t.astype(jnp.float32)
        + bias
    )
    assert logits.shape == (BATCH, VOCAB_SIZE)
    assert jnp.allclose(logits, ref, atol=1e-3, rtol=1e-3), float(
        jnp.max(jnp.abs(logits - ref))
    )

    print("KERNEL_OK")
</pallas_src>

<mosaic_0001>
module attributes {stable_mosaic.version = 11 : i64} {
  func.func @skipgram_kernel(%arg0: i32, %arg1: memref<8xi32, #tpu.memory_space<smem>>, %arg2: memref<256x128xf32, #tpu.memory_space<any>>, %arg3: memref<128x128xbf16, #tpu.memory_space<vmem>>, %arg4: memref<1x128xf32, #tpu.memory_space<vmem>>, %arg5: memref<8x128xf32, #tpu.memory_space<vmem>>, %arg6: memref<8x128xf32, #tpu.memory_space<vmem>>, %arg7: memref<8x!tpu.dma_semaphore, #tpu.memory_space<semaphore_mem>>) attributes {dimension_semantics = [#tpu.dimension_semantics<parallel>], iteration_bounds = array<i64: 2>, scalar_prefetch = 1 : i64, scratch_operands = 2 : i64, tpu.core_type = #tpu.core_type<tc>, window_params = [{}, {transform_indices = @transform_1, window_bounds = array<i64: 128, 128>}, {transform_indices = @transform_2, window_bounds = array<i64: 1, 128>}, {transform_indices = @transform_3, window_bounds = array<i64: 8, 128>}]} {
    %c0 = arith.constant 0 : index
    %0 = memref.load %arg1[%c0] : memref<8xi32, #tpu.memory_space<smem>>
    %c0_i32 = arith.constant 0 : i32
    %c255_i32 = arith.constant 255 : i32
    %1 = arith.maxsi %c0_i32, %0 : i32
    %2 = arith.minsi %c255_i32, %1 : i32
    %c0_i32_0 = arith.constant 0 : i32
    %c0_i32_1 = arith.constant 0 : i32
    %3 = tpu.memref_slice %arg2[%2, %c0_i32_1] : memref<256x128xf32, #tpu.memory_space<any>> -> memref<1x128xf32, #tpu.memory_space<any>>
    %c0_i32_2 = arith.constant 0 : i32
    %c0_i32_3 = arith.constant 0 : i32
    %4 = tpu.memref_slice %arg6[%c0_i32_2, %c0_i32_3] : memref<8x128xf32, #tpu.memory_space<vmem>> -> memref<1x128xf32, #tpu.memory_space<vmem>>
    %5 = tpu.memref_slice %arg7[%c0_i32_0] : memref<8x!tpu.dma_semaphore, #tpu.memory_space<semaphore_mem>> -> memref<1x!tpu.dma_semaphore, #tpu.memory_space<semaphore_mem>>
    %6 = tpu.memref_squeeze %5 : memref<1x!tpu.dma_semaphore, #tpu.memory_space<semaphore_mem>> -> memref<!tpu.dma_semaphore, #tpu.memory_space<semaphore_mem>>
    tpu.enqueue_dma source(%3 : memref<1x128xf32, #tpu.memory_space<any>>) target(%4 : memref<1x128xf32, #tpu.memory_space<vmem>>) target_semaphore(%6 : memref<!tpu.dma_semaphore, #tpu.memory_space<semaphore_mem>>)
    %c1 = arith.constant 1 : index
    %7 = memref.load %arg1[%c1] : memref<8xi32, #tpu.memory_space<smem>>
    %c0_i32_4 = arith.constant 0 : i32
    %c255_i32_5 = arith.constant 255 : i32
    %8 = arith.maxsi %c0_i32_4, %7 : i32
    %9 = arith.minsi %c255_i32_5, %8 : i32
    %c1_i32 = arith.constant 1 : i32
    %c0_i32_6 = arith.constant 0 : i32
    %10 = tpu.memref_slice %arg2[%9, %c0_i32_6] : memref<256x128xf32, #tpu.memory_space<any>> -> memref<1x128xf32, #tpu.memory_space<any>>
    %c1_i32_7 = arith.constant 1 : i32
    %c0_i32_8 = arith.constant 0 : i32
    %11 = tpu.memref_slice %arg6[%c1_i32_7, %c0_i32_8] : memref<8x128xf32, #tpu.memory_space<vmem>> -> memref<1x128xf32, #tpu.memory_space<vmem>>
    %12 = tpu.memref_slice %arg7[%c1_i32] : memref<8x!tpu.dma_semaphore, #tpu.memory_space<semaphore_mem>> -> memref<1x!tpu.dma_semaphore, #tpu.memory_space<semaphore_mem>>
    %13 = tpu.memref_squeeze %12 : memref<1x!tpu.dma_semaphore, #tpu.memory_space<semaphore_mem>> -> memref<!tpu.dma_semaphore, #tpu.memory_space<semaphore_mem>>
    tpu.enqueue_dma source(%10 : memref<1x128xf32, #tpu.memory_space<any>>) target(%11 : memref<1x128xf32, #tpu.memory_space<vmem>>) target_semaphore(%13 : memref<!tpu.dma_semaphore, #tpu.memory_space<semaphore_mem>>)
    %c2 = arith.constant 2 : index
    %14 = memref.load %arg1[%c2] : memref<8xi32, #tpu.memory_space<smem>>
    %c0_i32_9 = arith.constant 0 : i32
    %c255_i32_10 = arith.constant 255 : i32
    %15 = arith.maxsi %c0_i32_9, %14 : i32
    %16 = arith.minsi %c255_i32_10, %15 : i32
    %c2_i32 = arith.constant 2 : i32
    %c0_i32_11 = arith.constant 0 : i32
    %17 = tpu.memref_slice %arg2[%16, %c0_i32_11] : memref<256x128xf32, #tpu.memory_space<any>> -> memref<1x128xf32, #tpu.memory_space<any>>
    %c2_i32_12 = arith.constant 2 : i32
    %c0_i32_13 = arith.constant 0 : i32
    %18 = tpu.memref_slice %arg6[%c2_i32_12, %c0_i32_13] : memref<8x128xf32, #tpu.memory_space<vmem>> -> memref<1x128xf32, #tpu.memory_space<vmem>>
    %19 = tpu.memref_slice %arg7[%c2_i32] : memref<8x!tpu.dma_semaphore, #tpu.memory_space<semaphore_mem>> -> memref<1x!tpu.dma_semaphore, #tpu.memory_space<semaphore_mem>>
    %20 = tpu.memref_squeeze %19 : memref<1x!tpu.dma_semaphore, #tpu.memory_space<semaphore_mem>> -> memref<!tpu.dma_semaphore, #tpu.memory_space<semaphore_mem>>
    tpu.enqueue_dma source(%17 : memref<1x128xf32, #tpu.memory_space<any>>) target(%18 : memref<1x128xf32, #tpu.memory_space<vmem>>) target_semaphore(%20 : memref<!tpu.dma_semaphore, #tpu.memory_space<semaphore_mem>>)
    %c3 = arith.constant 3 : index
    %21 = memref.load %arg1[%c3] : memref<8xi32, #tpu.memory_space<smem>>
    %c0_i32_14 = arith.constant 0 : i32
    %c255_i32_15 = arith.constant 255 : i32
    %22 = arith.maxsi %c0_i32_14, %21 : i32
    %23 = arith.minsi %c255_i32_15, %22 : i32
    %c3_i32 = arith.constant 3 : i32
    %c0_i32_16 = arith.constant 0 : i32
    %24 = tpu.memref_slice %arg2[%23, %c0_i32_16] : memref<256x128xf32, #tpu.memory_space<any>> -> memref<1x128xf32, #tpu.memory_space<any>>
    %c3_i32_17 = arith.constant 3 : i32
    %c0_i32_18 = arith.constant 0 : i32
    %25 = tpu.memref_slice %arg6[%c3_i32_17, %c0_i32_18] : memref<8x128xf32, #tpu.memory_space<vmem>> -> memref<1x128xf32, #tpu.memory_space<vmem>>
    %26 = tpu.memref_slice %arg7[%c3_i32] : memref<8x!tpu.dma_semaphore, #tpu.memory_space<semaphore_mem>> -> memref<1x!tpu.dma_semaphore, #tpu.memory_space<semaphore_mem>>
    %27 = tpu.memref_squeeze %26 : memref<1x!tpu.dma_semaphore, #tpu.memory_space<semaphore_mem>> -> memref<!tpu.dma_semaphore, #tpu.memory_space<semaphore_mem>>
    tpu.enqueue_dma source(%24 : memref<1x128xf32, #tpu.memory_space<any>>) target(%25 : memref<1x128xf32, #tpu.memory_space<vmem>>) target_semaphore(%27 : memref<!tpu.dma_semaphore, #tpu.memory_space<semaphore_mem>>)
    %c4 = arith.constant 4 : index
    %28 = memref.load %arg1[%c4] : memref<8xi32, #tpu.memory_space<smem>>
    %c0_i32_19 = arith.constant 0 : i32
    %c255_i32_20 = arith.constant 255 : i32
    %29 = arith.maxsi %c0_i32_19, %28 : i32
    %30 = arith.minsi %c255_i32_20, %29 : i32
    %c4_i32 = arith.constant 4 : i32
    %c0_i32_21 = arith.constant 0 : i32
    %31 = tpu.memref_slice %arg2[%30, %c0_i32_21] : memref<256x128xf32, #tpu.memory_space<any>> -> memref<1x128xf32, #tpu.memory_space<any>>
    %c4_i32_22 = arith.constant 4 : i32
    %c0_i32_23 = arith.constant 0 : i32
    %32 = tpu.memref_slice %arg6[%c4_i32_22, %c0_i32_23] : memref<8x128xf32, #tpu.memory_space<vmem>> -> memref<1x128xf32, #tpu.memory_space<vmem>>
    %33 = tpu.memref_slice %arg7[%c4_i32] : memref<8x!tpu.dma_semaphore, #tpu.memory_space<semaphore_mem>> -> memref<1x!tpu.dma_semaphore, #tpu.memory_space<semaphore_mem>>
    %34 = tpu.memref_squeeze %33 : memref<1x!tpu.dma_semaphore, #tpu.memory_space<semaphore_mem>> -> memref<!tpu.dma_semaphore, #tpu.memory_space<semaphore_mem>>
    tpu.enqueue_dma source(%31 : memref<1x128xf32, #tpu.memory_space<any>>) target(%32 : memref<1x128xf32, #tpu.memory_space<vmem>>) target_semaphore(%34 : memref<!tpu.dma_semaphore, #tpu.memory_space<semaphore_mem>>)
    %c5 = arith.constant 5 : index
    %35 = memref.load %arg1[%c5] : memref<8xi32, #tpu.memory_space<smem>>
    %c0_i32_24 = arith.constant 0 : i32
    %c255_i32_25 = arith.constant 255 : i32
    %36 = arith.maxsi %c0_i32_24, %35 : i32
    %37 = arith.minsi %c255_i32_25, %36 : i32
    %c5_i32 = arith.constant 5 : i32
    %c0_i32_26 = arith.constant 0 : i32
    %38 = tpu.memref_slice %arg2[%37, %c0_i32_26] : memref<256x128xf32, #tpu.memory_space<any>> -> memref<1x128xf32, #tpu.memory_space<any>>
    %c5_i32_27 = arith.constant 5 : i32
    %c0_i32_28 = arith.constant 0 : i32
    %39 = tpu.memref_slice %arg6[%c5_i32_27, %c0_i32_28] : memref<8x128xf32, #tpu.memory_space<vmem>> -> memref<1x128xf32, #tpu.memory_space<vmem>>
    %40 = tpu.memref_slice %arg7[%c5_i32] : memref<8x!tpu.dma_semaphore, #tpu.memory_space<semaphore_mem>> -> memref<1x!tpu.dma_semaphore, #tpu.memory_space<semaphore_mem>>
    %41 = tpu.memref_squeeze %40 : memref<1x!tpu.dma_semaphore, #tpu.memory_space<semaphore_mem>> -> memref<!tpu.dma_semaphore, #tpu.memory_space<semaphore_mem>>
    tpu.enqueue_dma source(%38 : memref<1x128xf32, #tpu.memory_space<any>>) target(%39 : memref<1x128xf32, #tpu.memory_space<vmem>>) target_semaphore(%41 : memref<!tpu.dma_semaphore, #tpu.memory_space<semaphore_mem>>)
    %c6 = arith.constant 6 : index
    %42 = memref.load %arg1[%c6] : memref<8xi32, #tpu.memory_space<smem>>
    %c0_i32_29 = arith.constant 0 : i32
    %c255_i32_30 = arith.constant 255 : i32
    %43 = arith.maxsi %c0_i32_29, %42 : i32
    %44 = arith.minsi %c255_i32_30, %43 : i32
    %c6_i32 = arith.constant 6 : i32
    %c0_i32_31 = arith.constant 0 : i32
    %45 = tpu.memref_slice %arg2[%44, %c0_i32_31] : memref<256x128xf32, #tpu.memory_space<any>> -> memref<1x128xf32, #tpu.memory_space<any>>
    %c6_i32_32 = arith.constant 6 : i32
    %c0_i32_33 = arith.constant 0 : i32
    %46 = tpu.memref_slice %arg6[%c6_i32_32, %c0_i32_33] : memref<8x128xf32, #tpu.memory_space<vmem>> -> memref<1x128xf32, #tpu.memory_space<vmem>>
    %47 = tpu.memref_slice %arg7[%c6_i32] : memref<8x!tpu.dma_semaphore, #tpu.memory_space<semaphore_mem>> -> memref<1x!tpu.dma_semaphore, #tpu.memory_space<semaphore_mem>>
    %48 = tpu.memref_squeeze %47 : memref<1x!tpu.dma_semaphore, #tpu.memory_space<semaphore_mem>> -> memref<!tpu.dma_semaphore, #tpu.memory_space<semaphore_mem>>
    tpu.enqueue_dma source(%45 : memref<1x128xf32, #tpu.memory_space<any>>) target(%46 : memref<1x128xf32, #tpu.memory_space<vmem>>) target_semaphore(%48 : memref<!tpu.dma_semaphore, #tpu.memory_space<semaphore_mem>>)
    %c7 = arith.constant 7 : index
    %49 = memref.load %arg1[%c7] : memref<8xi32, #tpu.memory_space<smem>>
    %c0_i32_34 = arith.constant 0 : i32
    %c255_i32_35 = arith.constant 255 : i32
    %50 = arith.maxsi %c0_i32_34, %49 : i32
    %51 = arith.minsi %c255_i32_35, %50 : i32
    %c7_i32 = arith.constant 7 : i32
    %c0_i32_36 = arith.constant 0 : i32
    %52 = tpu.memref_slice %arg2[%51, %c0_i32_36] : memref<256x128xf32, #tpu.memory_space<any>> -> memref<1x128xf32, #tpu.memory_space<any>>
    %c7_i32_37 = arith.constant 7 : i32
    %c0_i32_38 = arith.constant 0 : i32
    %53 = tpu.memref_slice %arg6[%c7_i32_37, %c0_i32_38] : memref<8x128xf32, #tpu.memory_space<vmem>> -> memref<1x128xf32, #tpu.memory_space<vmem>>
    %54 = tpu.memref_slice %arg7[%c7_i32] : memref<8x!tpu.dma_semaphore, #tpu.memory_space<semaphore_mem>> -> memref<1x!tpu.dma_semaphore, #tpu.memory_space<semaphore_mem>>
    %55 = tpu.memref_squeeze %54 : memref<1x!tpu.dma_semaphore, #tpu.memory_space<semaphore_mem>> -> memref<!tpu.dma_semaphore, #tpu.memory_space<semaphore_mem>>
    tpu.enqueue_dma source(%52 : memref<1x128xf32, #tpu.memory_space<any>>) target(%53 : memref<1x128xf32, #tpu.memory_space<vmem>>) target_semaphore(%55 : memref<!tpu.dma_semaphore, #tpu.memory_space<semaphore_mem>>)
    %c0_i32_39 = arith.constant 0 : i32
    %c0_i32_40 = arith.constant 0 : i32
    %56 = tpu.memref_slice %arg2[%2, %c0_i32_40] : memref<256x128xf32, #tpu.memory_space<any>> -> memref<1x128xf32, #tpu.memory_space<any>>
    %c0_i32_41 = arith.constant 0 : i32
    %c0_i32_42 = arith.constant 0 : i32
    %57 = tpu.memref_slice %arg6[%c0_i32_41, %c0_i32_42] : memref<8x128xf32, #tpu.memory_space<vmem>> -> memref<1x128xf32, #tpu.memory_space<vmem>>
    %58 = tpu.memref_slice %arg7[%c0_i32_39] : memref<8x!tpu.dma_semaphore, #tpu.memory_space<semaphore_mem>> -> memref<1x!tpu.dma_semaphore, #tpu.memory_space<semaphore_mem>>
    %59 = tpu.memref_squeeze %58 : memref<1x!tpu.dma_semaphore, #tpu.memory_space<semaphore_mem>> -> memref<!tpu.dma_semaphore, #tpu.memory_space<semaphore_mem>>
    tpu.wait_dma2 semaphore(%59 : memref<!tpu.dma_semaphore, #tpu.memory_space<semaphore_mem>>) src(%56 : memref<1x128xf32, #tpu.memory_space<any>>) dst(%57 : memref<1x128xf32, #tpu.memory_space<vmem>>)
    %c1_i32_43 = arith.constant 1 : i32
    %c0_i32_44 = arith.constant 0 : i32
    %60 = tpu.memref_slice %arg2[%9, %c0_i32_44] : memref<256x128xf32, #tpu.memory_space<any>> -> memref<1x128xf32, #tpu.memory_space<any>>
    %c1_i32_45 = arith.constant 1 : i32
    %c0_i32_46 = arith.constant 0 : i32
    %61 = tpu.memref_slice %arg6[%c1_i32_45, %c0_i32_46] : memref<8x128xf32, #tpu.memory_space<vmem>> -> memref<1x128xf32, #tpu.memory_space<vmem>>
    %62 = tpu.memref_slice %arg7[%c1_i32_43] : memref<8x!tpu.dma_semaphore, #tpu.memory_space<semaphore_mem>> -> memref<1x!tpu.dma_semaphore, #tpu.memory_space<semaphore_mem>>
    %63 = tpu.memref_squeeze %62 : memref<1x!tpu.dma_semaphore, #tpu.memory_space<semaphore_mem>> -> memref<!tpu.dma_semaphore, #tpu.memory_space<semaphore_mem>>
    tpu.wait_dma2 semaphore(%63 : memref<!tpu.dma_semaphore, #tpu.memory_space<semaphore_mem>>) src(%60 : memref<1x128xf32, #tpu.memory_space<any>>) dst(%61 : memref<1x128xf32, #tpu.memory_space<vmem>>)
    %c2_i32_47 = arith.constant 2 : i32
    %c0_i32_48 = arith.constant 0 : i32
    %64 = tpu.memref_slice %arg2[%16, %c0_i32_48] : memref<256x128xf32, #tpu.memory_space<any>> -> memref<1x128xf32, #tpu.memory_space<any>>
    %c2_i32_49 = arith.constant 2 : i32
    %c0_i32_50 = arith.constant 0 : i32
    %65 = tpu.memref_slice %arg6[%c2_i32_49, %c0_i32_50] : memref<8x128xf32, #tpu.memory_space<vmem>> -> memref<1x128xf32, #tpu.memory_space<vmem>>
    %66 = tpu.memref_slice %arg7[%c2_i32_47] : memref<8x!tpu.dma_semaphore, #tpu.memory_space<semaphore_mem>> -> memref<1x!tpu.dma_semaphore, #tpu.memory_space<semaphore_mem>>
    %67 = tpu.memref_squeeze %66 : memref<1x!tpu.dma_semaphore, #tpu.memory_space<semaphore_mem>> -> memref<!tpu.dma_semaphore, #tpu.memory_space<semaphore_mem>>
    tpu.wait_dma2 semaphore(%67 : memref<!tpu.dma_semaphore, #tpu.memory_space<semaphore_mem>>) src(%64 : memref<1x128xf32, #tpu.memory_space<any>>) dst(%65 : memref<1x128xf32, #tpu.memory_space<vmem>>)
    %c3_i32_51 = arith.constant 3 : i32
    %c0_i32_52 = arith.constant 0 : i32
    %68 = tpu.memref_slice %arg2[%23, %c0_i32_52] : memref<256x128xf32, #tpu.memory_space<any>> -> memref<1x128xf32, #tpu.memory_space<any>>
    %c3_i32_53 = arith.constant 3 : i32
    %c0_i32_54 = arith.constant 0 : i32
    %69 = tpu.memref_slice %arg6[%c3_i32_53, %c0_i32_54] : memref<8x128xf32, #tpu.memory_space<vmem>> -> memref<1x128xf32, #tpu.memory_space<vmem>>
    %70 = tpu.memref_slice %arg7[%c3_i32_51] : memref<8x!tpu.dma_semaphore, #tpu.memory_space<semaphore_mem>> -> memref<1x!tpu.dma_semaphore, #tpu.memory_space<semaphore_mem>>
    %71 = tpu.memref_squeeze %70 : memref<1x!tpu.dma_semaphore, #tpu.memory_space<semaphore_mem>> -> memref<!tpu.dma_semaphore, #tpu.memory_space<semaphore_mem>>
    tpu.wait_dma2 semaphore(%71 : memref<!tpu.dma_semaphore, #tpu.memory_space<semaphore_mem>>) src(%68 : memref<1x128xf32, #tpu.memory_space<any>>) dst(%69 : memref<1x128xf32, #tpu.memory_space<vmem>>)
    %c4_i32_55 = arith.constant 4 : i32
    %c0_i32_56 = arith.constant 0 : i32
    %72 = tpu.memref_slice %arg2[%30, %c0_i32_56] : memref<256x128xf32, #tpu.memory_space<any>> -> memref<1x128xf32, #tpu.memory_space<any>>
    %c4_i32_57 = arith.constant 4 : i32
    %c0_i32_58 = arith.constant 0 : i32
    %73 = tpu.memref_slice %arg6[%c4_i32_57, %c0_i32_58] : memref<8x128xf32, #tpu.memory_space<vmem>> -> memref<1x128xf32, #tpu.memory_space<vmem>>
    %74 = tpu.memref_slice %arg7[%c4_i32_55] : memref<8x!tpu.dma_semaphore, #tpu.memory_space<semaphore_mem>> -> memref<1x!tpu.dma_semaphore, #tpu.memory_space<semaphore_mem>>
    %75 = tpu.memref_squeeze %74 : memref<1x!tpu.dma_semaphore, #tpu.memory_space<semaphore_mem>> -> memref<!tpu.dma_semaphore, #tpu.memory_space<semaphore_mem>>
    tpu.wait_dma2 semaphore(%75 : memref<!tpu.dma_semaphore, #tpu.memory_space<semaphore_mem>>) src(%72 : memref<1x128xf32, #tpu.memory_space<any>>) dst(%73 : memref<1x128xf32, #tpu.memory_space<vmem>>)
    %c5_i32_59 = arith.constant 5 : i32
    %c0_i32_60 = arith.constant 0 : i32
    %76 = tpu.memref_slice %arg2[%37, %c0_i32_60] : memref<256x128xf32, #tpu.memory_space<any>> -> memref<1x128xf32, #tpu.memory_space<any>>
    %c5_i32_61 = arith.constant 5 : i32
    %c0_i32_62 = arith.constant 0 : i32
    %77 = tpu.memref_slice %arg6[%c5_i32_61, %c0_i32_62] : memref<8x128xf32, #tpu.memory_space<vmem>> -> memref<1x128xf32, #tpu.memory_space<vmem>>
    %78 = tpu.memref_slice %arg7[%c5_i32_59] : memref<8x!tpu.dma_semaphore, #tpu.memory_space<semaphore_mem>> -> memref<1x!tpu.dma_semaphore, #tpu.memory_space<semaphore_mem>>
    %79 = tpu.memref_squeeze %78 : memref<1x!tpu.dma_semaphore, #tpu.memory_space<semaphore_mem>> -> memref<!tpu.dma_semaphore, #tpu.memory_space<semaphore_mem>>
    tpu.wait_dma2 semaphore(%79 : memref<!tpu.dma_semaphore, #tpu.memory_space<semaphore_mem>>) src(%76 : memref<1x128xf32, #tpu.memory_space<any>>) dst(%77 : memref<1x128xf32, #tpu.memory_space<vmem>>)
    %c6_i32_63 = arith.constant 6 : i32
    %c0_i32_64 = arith.constant 0 : i32
    %80 = tpu.memref_slice %arg2[%44, %c0_i32_64] : memref<256x128xf32, #tpu.memory_space<any>> -> memref<1x128xf32, #tpu.memory_space<any>>
    %c6_i32_65 = arith.constant 6 : i32
    %c0_i32_66 = arith.constant 0 : i32
    %81 = tpu.memref_slice %arg6[%c6_i32_65, %c0_i32_66] : memref<8x128xf32, #tpu.memory_space<vmem>> -> memref<1x128xf32, #tpu.memory_space<vmem>>
    %82 = tpu.memref_slice %arg7[%c6_i32_63] : memref<8x!tpu.dma_semaphore, #tpu.memory_space<semaphore_mem>> -> memref<1x!tpu.dma_semaphore, #tpu.memory_space<semaphore_mem>>
    %83 = tpu.memref_squeeze %82 : memref<1x!tpu.dma_semaphore, #tpu.memory_space<semaphore_mem>> -> memref<!tpu.dma_semaphore, #tpu.memory_space<semaphore_mem>>
    tpu.wait_dma2 semaphore(%83 : memref<!tpu.dma_semaphore, #tpu.memory_space<semaphore_mem>>) src(%80 : memref<1x128xf32, #tpu.memory_space<any>>) dst(%81 : memref<1x128xf32, #tpu.memory_space<vmem>>)
    %c7_i32_67 = arith.constant 7 : i32
    %c0_i32_68 = arith.constant 0 : i32
    %84 = tpu.memref_slice %arg2[%51, %c0_i32_68] : memref<256x128xf32, #tpu.memory_space<any>> -> memref<1x128xf32, #tpu.memory_space<any>>
    %c7_i32_69 = arith.constant 7 : i32
    %c0_i32_70 = arith.constant 0 : i32
    %85 = tpu.memref_slice %arg6[%c7_i32_69, %c0_i32_70] : memref<8x128xf32, #tpu.memory_space<vmem>> -> memref<1x128xf32, #tpu.memory_space<vmem>>
    %86 = tpu.memref_slice %arg7[%c7_i32_67] : memref<8x!tpu.dma_semaphore, #tpu.memory_space<semaphore_mem>> -> memref<1x!tpu.dma_semaphore, #tpu.memory_space<semaphore_mem>>
    %87 = tpu.memref_squeeze %86 : memref<1x!tpu.dma_semaphore, #tpu.memory_space<semaphore_mem>> -> memref<!tpu.dma_semaphore, #tpu.memory_space<semaphore_mem>>
    tpu.wait_dma2 semaphore(%87 : memref<!tpu.dma_semaphore, #tpu.memory_space<semaphore_mem>>) src(%84 : memref<1x128xf32, #tpu.memory_space<any>>) dst(%85 : memref<1x128xf32, #tpu.memory_space<vmem>>)
    %c0_71 = arith.constant 0 : index
    %c0_72 = arith.constant 0 : index
    %88 = vector.load %arg6[%c0_71, %c0_72] : memref<8x128xf32, #tpu.memory_space<vmem>>, vector<8x128xf32>
    %89 = arith.truncf %88 : vector<8x128xf32> to vector<8x128xbf16>
    %c0_73 = arith.constant 0 : index
    %c0_74 = arith.constant 0 : index
    %90 = vector.load %arg3[%c0_73, %c0_74] : memref<128x128xbf16, #tpu.memory_space<vmem>>, vector<128x128xbf16>
    %cst = arith.constant dense<0.000000e+00> : vector<8x128xf32>
    %91 = tpu.matmul %89, %90, %cst {dimension_numbers = #tpu.dot_dimension_numbers<[1], [0], [0], [1], [0, 0, 1, 1], [], []>} : vector<8x128xbf16>, vector<128x128xbf16>, vector<8x128xf32> -> vector<8x128xf32>
    %c0_75 = arith.constant 0 : index
    %c0_76 = arith.constant 0 : index
    %92 = vector.load %arg4[%c0_75, %c0_76] : memref<1x128xf32, #tpu.memory_space<vmem>>, vector<1x128xf32>
    %93 = vector.broadcast %92 : vector<1x128xf32> to vector<8x128xf32>
    %94 = arith.addf %91, %93 : vector<8x128xf32>
    %c0_77 = arith.constant 0 : index
    %c0_78 = arith.constant 0 : index
    %95 = vector.load %arg5[%c0_77, %c0_78] : memref<8x128xf32, #tpu.memory_space<vmem>>, vector<8x128xf32>
    tpu.vector_store %arg5[%c0_77, %c0_78], %94 {strides = array<i32>} : memref<8x128xf32, #tpu.memory_space<vmem>>, vector<8x128xf32>,
    return
  }
  func.func @transform_1(%arg0: i32, %arg1: memref<8xi32, #tpu.memory_space<smem>>) -> (i32, i32) {
    %c0_i32 = arith.constant 0 : i32
    %c0_i32_0 = arith.constant 0 : i32
    return %c0_i32, %arg0 : i32, i32
  }
  func.func @transform_2(%arg0: i32, %arg1: memref<8xi32, #tpu.memory_space<smem>>) -> (i32, i32) {
    %c0_i32 = arith.constant 0 : i32
    %c0_i32_0 = arith.constant 0 : i32
    return %c0_i32, %arg0 : i32, i32
  }
  func.func @transform_3(%arg0: i32, %arg1: memref<8xi32, #tpu.memory_space<smem>>) -> (i32, i32) {
    %c0_i32 = arith.constant 0 : i32
    %c0_i32_0 = arith.constant 0 : i32
    return %c0_i32, %arg0 : i32, i32
  }
}

</mosaic_0001>

<llo_original>
// kernel: tpu_custom_call.1
$region0: #{tpu_custom_call.1}
  #allocation0 [shape = 'u32[]', space=smem, size = 0x4, offset = 0x4, fixed_abs, tag = 'smem constant byte address 0x4 - core index']
  #allocation1 [shape = 'u32[144,128]{1,0:T(1,128)}', space=vmem, size = 0x12000, scoped, tag = 'internal scratch']
  #allocation2 [shape = 'f32[8,128]{1,0:T(8,128)}', space=vmem, size = 0x1000, scoped, tag = 'scratch operand']
  #allocation3 [shape = 's32[8]{0}', space=sflag, size = 0x20, scoped, tag = 'scratch operand']
  #allocation4 [shape = 's32[1]{0}', space=sflag, size = 0x4, scoped, tag = 'scoped memory for tpu_custom_call.1']
  #allocation5 [shape = 'u8[512]{0}', space=smem, size = 0x200, scoped, tag = 'prefetched SMEM operand 0']
  #allocation10 [shape = 's32[]', space=sflag, size = 0x4, offset = 0, fixed_abs, tag = 'sflag constant byte address 0x0 - dummy sync flag']
  #allocation11 [shape = 's32[]', space=sflag, size = 0x4, offset = 0, fixed_abs, tag = 'sflag constant byte address 0x0 - dummy sync flag']
  #allocation12 [shape = 'u32[]', space=smem, size = 0x4, offset = 0x44, fixed_abs, tag = 'smem constant byte address 0x44 - assertion arg 0']
  #allocation13 [shape = 'u32[]', space=smem, size = 0x4, offset = 0x48, fixed_abs, tag = 'smem constant byte address 0x48 - assertion arg 1']
  #allocation14 [shape = 's32[]', space=sflag, size = 0x4, offset = 0, fixed_abs, tag = 'sflag constant byte address 0x0 - dummy sync flag']
  #allocation15 [shape = 's32[]', space=sflag, size = 0x4, offset = 0, fixed_abs, tag = 'sflag constant byte address 0x0 - dummy sync flag']
  #allocation16 [shape = 's32[]', space=sflag, size = 0x4, offset = 0, fixed_abs, tag = 'sflag constant byte address 0x0 - dummy sync flag']
  #allocation17 [shape = 's32[]', space=sflag, size = 0x4, offset = 0, fixed_abs, tag = 'sflag constant byte address 0x0 - dummy sync flag']
  #allocation18 [shape = 's32[]', space=sflag, size = 0x4, offset = 0, fixed_abs, tag = 'sflag constant byte address 0x0 - dummy sync flag']
  #allocation19 [shape = 's32[]', space=sflag, size = 0x4, offset = 0, fixed_abs, tag = 'sflag constant byte address 0x0 - dummy sync flag']
  #allocation20 [shape = 's32[]', space=sflag, size = 0x4, offset = 0, fixed_abs, tag = 'sflag constant byte address 0x0 - dummy sync flag']
  #allocation21 [shape = 's32[]', space=sflag, size = 0x4, offset = 0, fixed_abs, tag = 'sflag constant byte address 0x0 - dummy sync flag']
  #allocation22 [shape = 's32[]', space=sflag, size = 0x4, offset = 0, fixed_abs, tag = 'sflag constant byte address 0x0 - dummy sync flag']
  #allocation23 [shape = 's32[]', space=sflag, size = 0x4, offset = 0, fixed_abs, tag = 'sflag constant byte address 0x0 - dummy sync flag']
  #allocation24 [shape = 's32[]', space=sflag, size = 0x4, offset = 0, fixed_abs, tag = 'sflag constant byte address 0x0 - dummy sync flag']
  #allocation25 [shape = 's32[]', space=sflag, size = 0x4, offset = 0, fixed_abs, tag = 'sflag constant byte address 0x0 - dummy sync flag']
  #allocation26 [shape = 's32[]', space=sflag, size = 0x4, offset = 0, fixed_abs, tag = 'sflag constant byte address 0x0 - dummy sync flag']
  #allocation27 [shape = 's32[]', space=sflag, size = 0x4, offset = 0, fixed_abs, tag = 'sflag constant byte address 0x0 - dummy sync flag']
  %s0 = inlined_call_operand.hbm [shape: s32[8], index: 0, kind: input, shape index: {}]
  %s1 = inlined_call_operand.hbm [shape: f32[256,128], index: 1, kind: input, shape index: {}]
  %s2 = inlined_call_operand.hbm [shape: bf16[128,256], index: 2, kind: input, shape index: {}]
  %s3 = inlined_call_operand.vmem [shape: f32[1,256], index: 3, kind: input, shape index: {}]
  %s4 = inlined_call_operand.hbm [shape: f32[8,256], index: 4, kind: output, shape index: {}]
  %s5 = sld [smem:[#allocation0]]
  $region77: #{tpu_custom_call.1} parent=0
    _
  %s7 = ssub.s32 1, %s5
  %s8 = scalar_select 0, %s7, %s5
  %10 = dma.hbm_to_smem %s0, 16, [#allocation5], [#allocation4]
  %11 = dma.done [#allocation4], 16
  %12 = sfence
  $region1: #{tpu_custom_call.1} parent=0
    #allocation6 [shape = 'u8[65536]{0}', space=vmem, size = 0x10000, scoped, tag = 'input window, operand 2']
    #allocation7 [shape = 's32[2]{0}', space=sflag, size = 0x8, scoped, tag = 'scoped memory for tpu_custom_call.1']
    #allocation8 [shape = 's32[2]{0}', space=sflag, size = 0x8, scoped, tag = 'scoped memory for tpu_custom_call.1']
    #allocation9 [shape = 'u8[8192]{0}', space=vmem, size = 0x2000, scoped, tag = 'output window, operand 0']
    %13 = vsyncpa [#allocation7], 0
    %s14 = scalar_lea.sflag [#allocation7], 1
    %15 = vsyncpa %s14, 0
    %16 = vsyncpa [#allocation8], 0
    %s17 = scalar_lea.sflag [#allocation8], 1
    %18 = vsyncpa %s17, 0
    loop: start=0, step=1, limit=4
    $region2: #{tpu_custom_call.1} parent=1 // loop_pre_header
      _
    $region3: #{tpu_custom_call.1} parent=1 // loop_header
      %s20 = sphi 0, %s24
      %p21 = scmp.ge.s32.totalorder %s20, 4
      %s30 = sphi 0, %s32
      %s33 = sphi 0, %s30
      %s34 = sphi 0, %s33
      %s50 = sphi 0, %s34
      %s56 = sphi 0, %s58
      %s59 = sphi 0, %s56
      %s60 = sphi 0, %s59
      %s76 = sphi 0, %s60
      %s82 = sphi 0, %s84
      %s85 = sphi 0, %s82
      %s86 = sphi 0, %s85
      %s102 = sphi 0, %s86
    $region4: #{tpu_custom_call.1} parent=1 // loop_header_branch
      %23 = sbr.rel (%p21) target = $region8
    $region5: #{tpu_custom_call.1} parent=1 // loop_body
      %s25 = ssub.s32 %s20, 1
      %s26 = ssub.s32 %s20, 2
      %s27 = sadd.s32 %s20, 1
      %s28 = ssub.s32 %s20, %s27
      %p29 = scmp.eq.s32.totalorder %s28, 0
      %s31 = sadd.s32 %s30, 1
      %s32 = scalar_select %p29, %s30, %s31
      %p35 = pneg %p29
      %p36 = scmp.eq.s32.totalorder %s20, 1
      %p37 = por %p35, %p36
      %p38 = scmp.ne.s32.totalorder %s30, %s33
      %p39 = scmp.eq.s32.totalorder %s20, 0
      %p40 = por %p38, %p39
      %p41 = scmp.ne.s32.totalorder %s30, %s33
      %p42 = scmp.eq.s32.totalorder %s25, 1
      %p43 = por %p41, %p42
      %p44 = scmp.ne.s32.totalorder %s33, %s34
      %p45 = scmp.eq.s32.totalorder %s25, 0
      %p46 = por %p44, %p45
      %p47 = scmp.ne.s32.totalorder %s33, %s34
      %p48 = scmp.eq.s32.totalorder %s26, 1
      %p49 = por %p47, %p48
      %p51 = scmp.ne.s32.totalorder %s34, %s50
      %p52 = scmp.eq.s32.totalorder %s26, 0
      %p53 = por %p51, %p52
      %s54 = ssub.s32 %s20, %s27
      %p55 = scmp.eq.s32.totalorder %s54, 0
      %s57 = sadd.s32 %s56, 1
      %s58 = scalar_select %p55, %s56, %s57
      %p61 = pneg %p55
      %p62 = scmp.eq.s32.totalorder %s20, 1
      %p63 = por %p61, %p62
      %p64 = scmp.ne.s32.totalorder %s56, %s59
      %p65 = scmp.eq.s32.totalorder %s20, 0
      %p66 = por %p64, %p65
      %p67 = scmp.ne.s32.totalorder %s56, %s59
      %p68 = scmp.eq.s32.totalorder %s25, 1
      %p69 = por %p67, %p68
      %p70 = scmp.ne.s32.totalorder %s59, %s60
      %p71 = scmp.eq.s32.totalorder %s25, 0
      %p72 = por %p70, %p71
      %p73 = scmp.ne.s32.totalorder %s59, %s60
      %p74 = scmp.eq.s32.totalorder %s26, 1
      %p75 = por %p73, %p74
      %p77 = scmp.ne.s32.totalorder %s60, %s76
      %p78 = scmp.eq.s32.totalorder %s26, 0
      %p79 = por %p77, %p78
      %s80 = ssub.s32 %s20, %s27
      %p81 = scmp.eq.s32.totalorder %s80, 0
      %s83 = sadd.s32 %s82, 1
      %s84 = scalar_select %p81, %s82, %s83
      %p87 = pneg %p81
      %p88 = scmp.eq.s32.totalorder %s20, 1
      %p89 = por %p87, %p88
      %p90 = scmp.ne.s32.totalorder %s82, %s85
      %p91 = scmp.eq.s32.totalorder %s20, 0
      %p92 = por %p90, %p91
      %p93 = scmp.ne.s32.totalorder %s82, %s85
      %p94 = scmp.eq.s32.totalorder %s25, 1
      %p95 = por %p93, %p94
      %p96 = scmp.ne.s32.totalorder %s85, %s86
      %p97 = scmp.eq.s32.totalorder %s25, 0
      %p98 = por %p96, %p97
      %p99 = scmp.ne.s32.totalorder %s85, %s86
      %p100 = scmp.eq.s32.totalorder %s26, 1
      %p101 = por %p99, %p100
      %p103 = scmp.ne.s32.totalorder %s86, %s102
      %p104 = scmp.eq.s32.totalorder %s26, 0
      %p105 = por %p103, %p104
      %p106 = scmp.le.s32.totalorder 1, %s20
      %p107 = scmp.lt.s32.totalorder %s20, 3
      %p108 = pnand %p106, %p107
      %p109 = pneg %p108
      // Predicated region
      $region9: #{tpu_custom_call.1} parent=5 // pred_check
        _
      $region10: #{tpu_custom_call.1} parent=5 // pred_check_branch
        %111 = sbr.rel (%p108) target = $region12
      $region11: #{tpu_custom_call.1} parent=5 // pred_region
        %s112 = ssub.s32 %s20, 1
      $region12: #{tpu_custom_call.1} parent=5 // pred_fallthru
        _
      %p113 = scmp.lt.s32.totalorder %s20, 2
      // Predicated region
      $region13: #{tpu_custom_call.1} parent=5 // pred_check
        %p114 = pneg %p113
      $region14: #{tpu_custom_call.1} parent=5 // pred_check_branch
        %116 = sbr.rel (%p114) target = $region16
      $region15: #{tpu_custom_call.1} parent=5 // pred_region
        // Predicated region
        $region17: #{tpu_custom_call.1} parent=15 // pred_check
          %p117 = pneg %p40
        $region18: #{tpu_custom_call.1} parent=15 // pred_check_branch
          %119 = sbr.rel (%p117) target = $region20
        $region19: #{tpu_custom_call.1} parent=15 // pred_region
          %s120 = sand.u32 %s30, 1
          %s121 = scalar_lea.sflag [#allocation7], %s120
          %s122 = sand.u32 %s30, 1
          %s123 = smul.addr %s122, 64
          %s124 = scalar_lea.vmem [#allocation6], %s123
          %s126 = ssub.s32 1024, 1024
          %127 = vsyncadd %s121, %s126
          %s128 = smul.addr %s20, 64
          %s129 = scalar_lea.hbm %s2, %s128
          %s130 = sshll.u32 %s124, 4
          %s131 = int_to_ptr.vmem [resolvable:$true] %s130
          %136 = dma.hbm_to_vmem [thread:$0]  %s129, 1024, %s131, %s121, 128, 64, 4
        $region20: #{tpu_custom_call.1} parent=15 // pred_fallthru
          _
        // Predicated region
        $region21: #{tpu_custom_call.1} parent=15 // pred_check
          %p137 = pneg %p66
        $region22: #{tpu_custom_call.1} parent=15 // pred_check_branch
          %139 = sbr.rel (%p137) target = $region24
        $region23: #{tpu_custom_call.1} parent=15 // pred_region
          %p140 = scmp.lt.s32.totalorder %s20, 1
          %s141 = scalar_select %p140, %s20, 1
          %s142 = scalar_lea.vmem %s3, %s141
        $region24: #{tpu_custom_call.1} parent=15 // pred_fallthru
          _
      $region16: #{tpu_custom_call.1} parent=5 // pred_fallthru
        _
      %p143 = scmp.le.s32.totalorder 1, %s20
      %p144 = scmp.lt.s32.totalorder %s20, 3
      %p145 = pnand %p143, %p144
      %p146 = pneg %p145
      // Predicated region
      $region25: #{tpu_custom_call.1} parent=5 // pred_check
        _
      $region26: #{tpu_custom_call.1} parent=5 // pred_check_branch
        %148 = sbr.rel (%p145) target = $region28
      $region27: #{tpu_custom_call.1} parent=5 // pred_region
        %s149 = ssub.s32 %s20, 1
        %s150 = sand.u32 %s33, 1
        %s151 = scalar_lea.sflag [#allocation7], %s150
        %s152 = sand.u32 %s33, 1
        %s153 = smul.addr %s152, 64
        %s154 = scalar_lea.vmem [#allocation6], %s153
        // Predicated region
        $region29: #{tpu_custom_call.1} parent=27 // pred_check
          %p155 = pneg %p46
        $region30: #{tpu_custom_call.1} parent=27 // pred_check_branch
          %157 = sbr.rel (%p155) target = $region32
        $region31: #{tpu_custom_call.1} parent=27 // pred_region
          %158 = dma.done %s151, 1024
        $region32: #{tpu_custom_call.1} parent=27 // pred_fallthru
          _
        %s159 = sand.u32 %s33, 1
        %s160 = scalar_lea.sflag [#allocation7], %s159
        %s161 = sand.u32 %s33, 1
        %s162 = smul.addr %s161, 64
        %s163 = scalar_lea.vmem [#allocation6], %s162
        %p164 = pneg %p46
        %p165 = pneg %p43
        %p166 = scmp.lt.s32.totalorder %s25, 1
        %s167 = scalar_select %p166, %s25, 1
        %s168 = scalar_lea.vmem %s3, %s167
        %p169 = pneg %p72
        %p170 = pneg %p69
        %p171 = pneg %p98
        %p172 = pneg %p95
        %s173 = sand.u32 %s85, 1
        %s174 = scalar_lea.sflag [#allocation8], %s173
        %s175 = sand.u32 %s85, 1
        %s176 = smul.addr %s175, 8
        %s177 = scalar_lea.vmem [#allocation9], %s176
        %p178 = scmp.lt.s32.totalorder %s25, 1
        %s179 = scalar_select %p178, %s25, 1
        %s180 = scalar_lea.vmem %s3, %s179
        %s182 = sld [smem:[#allocation5]]
        %p183 = scmp.gt.s32.totalorder %s182, 0
        %s184 = scalar_select %p183, %s182, 0
        %p185 = scmp.lt.s32.totalorder %s184, 255
        %s186 = scalar_select %p185, %s184, 255
        %s187 = smul.addr %s186, 16
        %s188 = scalar_lea.hbm %s1, %s187
        // Predicated region
        $region33: #{tpu_custom_call.1} parent=27 // pred_check
          _
        $region34: #{tpu_custom_call.1} parent=27 // pred_check_branch
          %190 = sbr.rel target = $region36
        $region35: #{tpu_custom_call.1} parent=27 // pred_region
          %191 = sst [smem:[#allocation12]] [#allocation11]
          %192 = sst [smem:[#allocation13]] [#allocation10]
        $region36: #{tpu_custom_call.1} parent=27 // pred_fallthru
          _
        %194 = shalt.err (0)
        %s196 = sshll.u32 [#allocation2], 4
        %s197 = int_to_ptr.vmem [resolvable:$true] %s196
        %199 = dma.hbm_to_vmem [thread:$0]  %s188, 16, %s197, [#allocation3]
        %s200 = sld [smem:[#allocation5 + $0x1]]
        %p201 = scmp.gt.s32.totalorder %s200, 0
        %s202 = scalar_select %p201, %s200, 0
        %p203 = scmp.lt.s32.totalorder %s202, 255
        %s204 = scalar_select %p203, %s202, 255
        %s205 = smul.addr %s204, 16
        %s206 = scalar_lea.hbm %s1, %s205
        %s207 = scalar_lea.vmem [#allocation2], 1
        %s208 = scalar_lea.sflag [#allocation3], 1
        // Predicated region
        $region37: #{tpu_custom_call.1} parent=27 // pred_check
          _
        $region38: #{tpu_custom_call.1} parent=27 // pred_check_branch
          %210 = sbr.rel target = $region40
        $region39: #{tpu_custom_call.1} parent=27 // pred_region
          %211 = sst [smem:[#allocation12]] [#allocation15]
          %212 = sst [smem:[#allocation13]] [#allocation14]
        $region40: #{tpu_custom_call.1} parent=27 // pred_fallthru
          _
        %214 = shalt.err (0)
        %s216 = sshll.u32 %s207, 4
        %s217 = int_to_ptr.vmem [resolvable:$true] %s216
        %219 = dma.hbm_to_vmem [thread:$0]  %s206, 16, %s217, %s208
        %s220 = sld [smem:[#allocation5 + $0x2]]
        %p221 = scmp.gt.s32.totalorder %s220, 0
        %s222 = scalar_select %p221, %s220, 0
        %p223 = scmp.lt.s32.totalorder %s222, 255
        %s224 = scalar_select %p223, %s222, 255
        %s225 = smul.addr %s224, 16
        %s226 = scalar_lea.hbm %s1, %s225
        %s227 = scalar_lea.vmem [#allocation2], 2
        %s228 = scalar_lea.sflag [#allocation3], 2
        // Predicated region
        $region41: #{tpu_custom_call.1} parent=27 // pred_check
          _
        $region42: #{tpu_custom_call.1} parent=27 // pred_check_branch
          %230 = sbr.rel target = $region44
        $region43: #{tpu_custom_call.1} parent=27 // pred_region
          %231 = sst [smem:[#allocation12]] [#allocation17]
          %232 = sst [smem:[#allocation13]] [#allocation16]
        $region44: #{tpu_custom_call.1} parent=27 // pred_fallthru
          _
        %234 = shalt.err (0)
        %s236 = sshll.u32 %s227, 4
        %s237 = int_to_ptr.vmem [resolvable:$true] %s236
        %239 = dma.hbm_to_vmem [thread:$0]  %s226, 16, %s237, %s228
        %s240 = sld [smem:[#allocation5 + $0x3]]
        %p241 = scmp.gt.s32.totalorder %s240, 0
        %s242 = scalar_select %p241, %s240, 0
        %p243 = scmp.lt.s32.totalorder %s242, 255
        %s244 = scalar_select %p243, %s242, 255
        %s245 = smul.addr %s244, 16
        %s246 = scalar_lea.hbm %s1, %s245
        %s247 = scalar_lea.vmem [#allocation2], 3
        %s248 = scalar_lea.sflag [#allocation3], 3
        // Predicated region
        $region45: #{tpu_custom_call.1} parent=27 // pred_check
          _
        $region46: #{tpu_custom_call.1} parent=27 // pred_check_branch
          %250 = sbr.rel target = $region48
        $region47: #{tpu_custom_call.1} parent=27 // pred_region
          %251 = sst [smem:[#allocation12]] [#allocation19]
          %252 = sst [smem:[#allocation13]] [#allocation18]
        $region48: #{tpu_custom_call.1} parent=27 // pred_fallthru
          _
        %254 = shalt.err (0)
        %s256 = sshll.u32 %s247, 4
        %s257 = int_to_ptr.vmem [resolvable:$true] %s256
        %259 = dma.hbm_to_vmem [thread:$0]  %s246, 16, %s257, %s248
        %s260 = sld [smem:[#allocation5 + $0x4]]
        %p261 = scmp.gt.s32.totalorder %s260, 0
        %s262 = scalar_select %p261, %s260, 0
        %p263 = scmp.lt.s32.totalorder %s262, 255
        %s264 = scalar_select %p263, %s262, 255
        %s265 = smul.addr %s264, 16
        %s266 = scalar_lea.hbm %s1, %s265
        %s267 = scalar_lea.vmem [#allocation2], 4
        %s268 = scalar_lea.sflag [#allocation3], 4
        // Predicated region
        $region49: #{tpu_custom_call.1} parent=27 // pred_check
          _
        $region50: #{tpu_custom_call.1} parent=27 // pred_check_branch
          %270 = sbr.rel target = $region52
        $region51: #{tpu_custom_call.1} parent=27 // pred_region
          %271 = sst [smem:[#allocation12]] [#allocation21]
          %272 = sst [smem:[#allocation13]] [#allocation20]
        $region52: #{tpu_custom_call.1} parent=27 // pred_fallthru
          _
        %274 = shalt.err (0)
        %s276 = sshll.u32 %s267, 4
        %s277 = int_to_ptr.vmem [resolvable:$true] %s276
        %279 = dma.hbm_to_vmem [thread:$0]  %s266, 16, %s277, %s268
        %s280 = sld [smem:[#allocation5 + $0x5]]
        %p281 = scmp.gt.s32.totalorder %s280, 0
        %s282 = scalar_select %p281, %s280, 0
        %p283 = scmp.lt.s32.totalorder %s282, 255
        %s284 = scalar_select %p283, %s282, 255
        %s285 = smul.addr %s284, 16
        %s286 = scalar_lea.hbm %s1, %s285
        %s287 = scalar_lea.vmem [#allocation2], 5
        %s288 = scalar_lea.sflag [#allocation3], 5
        // Predicated region
        $region53: #{tpu_custom_call.1} parent=27 // pred_check
          _
        $region54: #{tpu_custom_call.1} parent=27 // pred_check_branch
          %290 = sbr.rel target = $region56
        $region55: #{tpu_custom_call.1} parent=27 // pred_region
          %291 = sst [smem:[#allocation12]] [#allocation23]
          %292 = sst [smem:[#allocation13]] [#allocation22]
        $region56: #{tpu_custom_call.1} parent=27 // pred_fallthru
          _
        %294 = shalt.err (0)
        %s296 = sshll.u32 %s287, 4
        %s297 = int_to_ptr.vmem [resolvable:$true] %s296
        %299 = dma.hbm_to_vmem [thread:$0]  %s286, 16, %s297, %s288
        %s300 = sld [smem:[#allocation5 + $0x6]]
        %p301 = scmp.gt.s32.totalorder %s300, 0
        %s302 = scalar_select %p301, %s300, 0
        %p303 = scmp.lt.s32.totalorder %s302, 255
        %s304 = scalar_select %p303, %s302, 255
        %s305 = smul.addr %s304, 16
        %s306 = scalar_lea.hbm %s1, %s305
        %s307 = scalar_lea.vmem [#allocation2], 6
        %s308 = scalar_lea.sflag [#allocation3], 6
        // Predicated region
        $region57: #{tpu_custom_call.1} parent=27 // pred_check
          _
        $region58: #{tpu_custom_call.1} parent=27 // pred_check_branch
          %310 = sbr.rel target = $region60
        $region59: #{tpu_custom_call.1} parent=27 // pred_region
          %311 = sst [smem:[#allocation12]] [#allocation25]
          %312 = sst [smem:[#allocation13]] [#allocation24]
        $region60: #{tpu_custom_call.1} parent=27 // pred_fallthru
          _
        %314 = shalt.err (0)
        %s316 = sshll.u32 %s307, 4
        %s317 = int_to_ptr.vmem [resolvable:$true] %s316
        %319 = dma.hbm_to_vmem [thread:$0]  %s306, 16, %s317, %s308
        %s320 = sld [smem:[#allocation5 + $0x7]]
        %p321 = scmp.gt.s32.totalorder %s320, 0
        %s322 = scalar_select %p321, %s320, 0
        %p323 = scmp.lt.s32.totalorder %s322, 255
        %s324 = scalar_select %p323, %s322, 255
        %s325 = smul.addr %s324, 16
        %s326 = scalar_lea.hbm %s1, %s325
        %s327 = scalar_lea.vmem [#allocation2], 7
        %s328 = scalar_lea.sflag [#allocation3], 7
        // Predicated region
        $region61: #{tpu_custom_call.1} parent=27 // pred_check
          _
        $region62: #{tpu_custom_call.1} parent=27 // pred_check_branch
          %330 = sbr.rel target = $region64
        $region63: #{tpu_custom_call.1} parent=27 // pred_region
          %331 = sst [smem:[#allocation12]] [#allocation27]
          %332 = sst [smem:[#allocation13]] [#allocation26]
        $region64: #{tpu_custom_call.1} parent=27 // pred_fallthru
          _
        %334 = shalt.err (0)
        %s336 = sshll.u32 %s327, 4
        %s337 = int_to_ptr.vmem [resolvable:$true] %s336
        %339 = dma.hbm_to_vmem [thread:$0]  %s326, 16, %s337, %s328
        %s340 = smul.u32 1, 1
        %s341 = sshll.u32 %s340, 4
        %342 = dma.done [#allocation3], %s341
        %s343 = sshll.u32 %s340, 4
        %344 = dma.done %s208, %s343
        %s345 = sshll.u32 %s340, 4
        %346 = dma.done %s228, %s345
        %s347 = sshll.u32 %s340, 4
        %348 = dma.done %s248, %s347
        %s349 = sshll.u32 %s340, 4
        %350 = dma.done %s268, %s349
        %s351 = sshll.u32 %s340, 4
        %352 = dma.done %s288, %s351
        %s353 = sshll.u32 %s340, 4
        %354 = dma.done %s308, %s353
        %s355 = sshll.u32 %s340, 4
        %356 = dma.done %s328, %s355
        %v357 = vld [vmem:[#allocation2] sm:$0xff]
        %v358 = vpack.c.bf16 %v357, %v357
        %v359 = vld [vmem:[%s154] sm:$0xf]
        %v360 = vld [vmem:[%s154 + $0x4] sm:$0xf]
        %v361 = vld [vmem:[%s154 + $0x8] sm:$0xf]
        %v362 = vld [vmem:[%s154 + $0xc] sm:$0xf]
        %v363 = vld [vmem:[%s154 + $0x10] sm:$0xf]
        %v364 = vld [vmem:[%s154 + $0x14] sm:$0xf]
        %v365 = vld [vmem:[%s154 + $0x18] sm:$0xf]
        %v366 = vld [vmem:[%s154 + $0x1c] sm:$0xf]
        %v367 = vld [vmem:[%s154 + $0x20] sm:$0xf]
        %v368 = vld [vmem:[%s154 + $0x24] sm:$0xf]
        %v369 = vld [vmem:[%s154 + $0x28] sm:$0xf]
        %v370 = vld [vmem:[%s154 + $0x2c] sm:$0xf]
        %v371 = vld [vmem:[%s154 + $0x30] sm:$0xf]
        %v372 = vld [vmem:[%s154 + $0x34] sm:$0xf]
        %v373 = vld [vmem:[%s154 + $0x38] sm:$0xf]
        %v374 = vld [vmem:[%s154 + $0x3c] sm:$0xf]
        %v375 = vld [vmem:[%s180] sm:$0x1]
        %v377 = vlaneseq
        %v378 = vshrl.u32 %v377, 7
        %v379 = vsub.s32 0, %v378
        %v380 = vrot.slane %v375, %v379
        %v398 = vunpack.c.l.b16 %v359
        %v399 = vunpack.c.l.b16 %v360
        %v400 = vunpack.c.l.b16 %v361
        %v401 = vunpack.c.l.b16 %v362
        %v402 = vunpack.c.l.b16 %v363
        %v403 = vunpack.c.l.b16 %v364
        %v404 = vunpack.c.l.b16 %v365
        %v405 = vunpack.c.l.b16 %v366
        %v406 = vunpack.c.l.b16 %v367
        %v407 = vunpack.c.l.b16 %v368
        %v408 = vunpack.c.l.b16 %v369
        %v409 = vunpack.c.l.b16 %v370
        %v410 = vunpack.c.l.b16 %v371
        %v411 = vunpack.c.l.b16 %v372
        %v412 = vunpack.c.l.b16 %v373
        %v413 = vunpack.c.l.b16 %v374
        %v414 = vpack.c.b16 %v399, %v398
        %v415 = vpack.c.b16 %v401, %v400
        %v416 = vpack.c.b16 %v403, %v402
        %v417 = vpack.c.b16 %v405, %v404
        %v418 = vpack.c.b16 %v407, %v406
        %v419 = vpack.c.b16 %v409, %v408
        %v420 = vpack.c.b16 %v411, %v410
        %v421 = vpack.c.b16 %v413, %v412
        %430 = vmatprep.subr.bf16.mxu0 0
        %431 = vmatpush1.bf16.msra.mxu0 %v414
        %432 = vmatprep.subr.bf16.mxu0 0
        %433 = vmatpush1.bf16.msra.mxu0 %v415
        %434 = vmatprep.subr.bf16.mxu0 0
        %435 = vmatpush1.bf16.msra.mxu0 %v416
        %436 = vmatprep.subr.bf16.mxu0 0
        %437 = vmatpush1.bf16.msra.mxu0 %v417
        %438 = vmatprep.subr.bf16.mxu0 0
        %439 = vmatpush1.bf16.msra.mxu0 %v418
        %440 = vmatprep.subr.bf16.mxu0 0
        %441 = vmatpush1.bf16.msra.mxu0 %v419
        %442 = vmatprep.subr.bf16.mxu0 0
        %443 = vmatpush1.bf16.msra.mxu0 %v420
        %444 = vmatprep.subr.bf16.mxu0 0
        %445 = vmatpush1.bf16.msra.mxu0 %v421
        %446 = vmatprep.subr.bf16.mxu0 0
        %447 = vmatpush1.bf16.msra.mxu0 0
        %448 = vmatprep.subr.bf16.mxu0 0
        %449 = vmatpush1.bf16.msra.mxu0 0
        %450 = vmatprep.subr.bf16.mxu0 0
        %451 = vmatpush1.bf16.msra.mxu0 0
        %452 = vmatprep.subr.bf16.mxu0 0
        %453 = vmatpush1.bf16.msra.mxu0 0
        %454 = vmatprep.subr.bf16.mxu0 0
        %455 = vmatpush1.bf16.msra.mxu0 0
        %456 = vmatprep.subr.bf16.mxu0 0
        %457 = vmatpush1.bf16.msra.mxu0 0
        %458 = vmatprep.subr.bf16.mxu0 0
        %459 = vmatpush1.bf16.msra.mxu0 0
        %460 = vmatprep.subr.bf16.mxu0 0
        %461 = vmatpush1.bf16.msra.mxu0 0
        %462 = vmatprep.mubr.bf16.mxu0 0
        %463 = vmatmul.mubr.bf16.gmra.mrb[0].mxu0 %v358
        %v464 = vpop.f32.mrb[0].mxu0
        %v465 = vadd.f32 %v380, %v464
        %v466 = vpop.f32.mrb[0].mxu0
        %v467 = vpop.f32.mrb[0].mxu0
        %v468 = vpop.f32.mrb[0].mxu0
        %469 = vdwg.mxu0
        %470 = vst [vmem:[%s177] sm:$0xff] %v465
        %s471 = sand.u32 %s85, 1
        %s472 = scalar_lea.sflag [#allocation8], %s471
        %s473 = sand.u32 %s85, 1
        %s474 = smul.addr %s473, 8
        %s475 = scalar_lea.vmem [#allocation9], %s474
        // Predicated region
        $region65: #{tpu_custom_call.1} parent=27 // pred_check
          %p476 = pneg %p95
        $region66: #{tpu_custom_call.1} parent=27 // pred_check_branch
          %478 = sbr.rel (%p476) target = $region68
        $region67: #{tpu_custom_call.1} parent=27 // pred_region
          %s480 = ssub.s32 128, 128
          %481 = vsyncadd %s472, %s480
          %s482 = smul.addr %s25, 128
          %s483 = scalar_lea.hbm %s4, %s482
          %s485 = sshll.u32 %s475, 4
          %s486 = int_to_ptr.vmem [resolvable:$true] %s485
          %488 = dma.vmem_to_hbm [thread:$0]  %s486, 128, %s483, %s472
        $region68: #{tpu_custom_call.1} parent=27 // pred_fallthru
          _
      $region28: #{tpu_custom_call.1} parent=5 // pred_fallthru
        _
      %p489 = scmp.le.s32.totalorder 2, %s20
      // Predicated region
      $region69: #{tpu_custom_call.1} parent=5 // pred_check
        %p490 = pneg %p489
      $region70: #{tpu_custom_call.1} parent=5 // pred_check_branch
        %492 = sbr.rel (%p490) target = $region72
      $region71: #{tpu_custom_call.1} parent=5 // pred_region
        %s493 = ssub.s32 %s20, 2
        // Predicated region
        $region73: #{tpu_custom_call.1} parent=71 // pred_check
          %p494 = pneg %p101
        $region74: #{tpu_custom_call.1} parent=71 // pred_check_branch
          %496 = sbr.rel (%p494) target = $region76
        $region75: #{tpu_custom_call.1} parent=71 // pred_region
          %s497 = sand.u32 %s86, 1
          %s498 = scalar_lea.sflag [#allocation8], %s497
          %s499 = sand.u32 %s86, 1
          %s500 = smul.addr %s499, 8
          %s501 = scalar_lea.vmem [#allocation9], %s500
          %502 = dma.done %s498, 128
        $region76: #{tpu_custom_call.1} parent=71 // pred_fallthru
          _
      $region72: #{tpu_custom_call.1} parent=5 // pred_fallthru
        _
    $region6: #{tpu_custom_call.1} parent=1 // loop_footer
      %s24 = sadd.s32 1, %s20
    $region7: #{tpu_custom_call.1} parent=1 // loop_footer_branch
      %19 = sbr.rel target = $region3
    $region8: #{tpu_custom_call.1} parent=1 // loop_exit
      _
    %503 = vsyncpa [#allocation7], 1
    %s504 = scalar_lea.sflag [#allocation7], 1
    %505 = vsyncpa %s504, 1
    %506 = vsyncpa [#allocation8], 1
    %s507 = scalar_lea.sflag [#allocation8], 1
    %508 = vsyncpa %s507, 1
  %509 = vsyncmov [#allocation3]
  %s510 = vpop.sfrf %509
  %p511 = scmp.eq.s32.totalorder %s510, 0
  %p512 = pneg %p511
  %514 = shalt.err (%p512)
  %s515 = scalar_lea.sflag [#allocation3], 1
  %516 = vsyncmov %s515
  %s517 = vpop.sfrf %516
  %p518 = scmp.eq.s32.totalorder %s517, 0
  %p519 = pneg %p518
  %521 = shalt.err (%p519)
  %s522 = scalar_lea.sflag [#allocation3], 2
  %523 = vsyncmov %s522
  %s524 = vpop.sfrf %523
  %p525 = scmp.eq.s32.totalorder %s524, 0
  %p526 = pneg %p525
  %528 = shalt.err (%p526)
  %s529 = scalar_lea.sflag [#allocation3], 3
  %530 = vsyncmov %s529
  %s531 = vpop.sfrf %530
  %p532 = scmp.eq.s32.totalorder %s531, 0
  %p533 = pneg %p532
  %535 = shalt.err (%p533)
  %s536 = scalar_lea.sflag [#allocation3], 4
  %537 = vsyncmov %s536
  %s538 = vpop.sfrf %537
  %p539 = scmp.eq.s32.totalorder %s538, 0
  %p540 = pneg %p539
  %542 = shalt.err (%p540)
  %s543 = scalar_lea.sflag [#allocation3], 5
  %544 = vsyncmov %s543
  %s545 = vpop.sfrf %544
  %p546 = scmp.eq.s32.totalorder %s545, 0
  %p547 = pneg %p546
  %549 = shalt.err (%p547)
  %s550 = scalar_lea.sflag [#allocation3], 6
  %551 = vsyncmov %s550
  %s552 = vpop.sfrf %551
  %p553 = scmp.eq.s32.totalorder %s552, 0
  %p554 = pneg %p553
  %556 = shalt.err (%p554)
  %s557 = scalar_lea.sflag [#allocation3], 7
  %558 = vsyncmov %s557
  %s559 = vpop.sfrf %558
  %p560 = scmp.eq.s32.totalorder %s559, 0
  %p561 = pneg %p560
  %563 = shalt.err (%p561)

</llo_original>
